<compile_context>
chip_gen: v7x
topology: tpu7x:2x2x1
jax: 0.10.0
libtpu: 0.0.40
codegen_flags: <defaults>
</compile_context>

<pallas_src>
import functools

import jax
import jax.numpy as jnp
from jax.experimental import pallas as pl
from jax.experimental.pallas import tpu as pltpu


def _layer_kernel(x_ref, wqkv_ref, wo_ref, w1_ref, w2_ref, bias_ref, o_ref, *, eps):
    bt, s, e = x_ref.shape
    rows = bt * s

    # Packed bias / LayerNorm-affine table (16,E): slice rows straight off the ref.
    bq, bk, bv = bias_ref[0:1, :], bias_ref[1:2, :], bias_ref[2:3, :]
    bo, b1, b2 = bias_ref[3:4, :], bias_ref[4:5, :], bias_ref[5:6, :]
    g1, be1 = bias_ref[6:7, :], bias_ref[7:8, :]
    g2, be2 = bias_ref[8:9, :], bias_ref[9:10, :]

    x_bf = x_ref[...].reshape(rows, e)        # bf16; leading-dim-only reshape (no relayout)
    x_f32 = x_bf.astype(jnp.float32)          # residual kept in f32 vregs

    # ---- fused Q/K/V projection: one MXU weight push, f32 accumulation ----
    qkv = jnp.dot(x_bf, wqkv_ref[...], preferred_element_type=jnp.float32)  # (rows, 3E)

    # Bias-add + 1/sqrt(E) fold + bf16 downcast fused per slice; no f32 q/k/v kept live.
    scale = 1.0 / jnp.sqrt(jnp.float32(e))
    qb = ((qkv[:, 0:e] + bq) * scale).astype(jnp.bfloat16).reshape(bt, s, e)
    kb = (qkv[:, e:2 * e] + bk).astype(jnp.bfloat16).reshape(bt, s, e)
    vb = (qkv[:, 2 * e:3 * e] + bv).astype(jnp.bfloat16).reshape(bt, s, e)

    # ---- attention scores per batch row: contract on last dims (no explicit K^T) ----
    scores = jax.lax.dot_general(
        qb, kb, dimension_numbers=(((2,), (2,)), ((0,), (0,))),
        preferred_element_type=jnp.float32)                 # (bt, s, s) f32

    # softmax (max-stabilized f32; divide on the EUP via approx reciprocal)
    m = jnp.max(scores, axis=-1, keepdims=True)
    p = jnp.exp(scores - m)
    denom = jnp.sum(p, axis=-1, keepdims=True)
    attn = p * pl.reciprocal(denom, approx=True)

    ctx = jax.lax.dot_general(
        attn.astype(jnp.bfloat16), vb,
        dimension_numbers=(((2,), (1,)), ((0,), (0,))),
        preferred_element_type=jnp.float32)                 # (bt, s, e) f32

    attn_out = jnp.dot(ctx.astype(jnp.bfloat16).reshape(rows, e), wo_ref[...],
                       preferred_element_type=jnp.float32) + bo

    # ---- residual + LayerNorm 1 (f32; biased variance == PyTorch LayerNorm) ----
    h = x_f32 + attn_out
    mu = jnp.mean(h, axis=-1, keepdims=True)
    var = jnp.mean((h - mu) * (h - mu), axis=-1, keepdims=True)
    h = (h - mu) * jax.lax.rsqrt(var + eps) * g1 + be1
    # dropout_after_self_attention: identity in eval mode

    # ---- MLP: Linear -> ReLU -> Linear (bf16 MXU operands, f32 accumulation) ----
    z = jnp.dot(h.astype(jnp.bfloat16), w1_ref[...],
                preferred_element_type=jnp.float32) + b1
    z = jnp.maximum(z, 0.0)
    mlp_out = jnp.dot(z.astype(jnp.bfloat16), w2_ref[...],
                      preferred_element_type=jnp.float32) + b2

    # ---- residual + LayerNorm 2 ----
    h2 = h + mlp_out
    mu2 = jnp.mean(h2, axis=-1, keepdims=True)
    var2 = jnp.mean((h2 - mu2) * (h2 - mu2), axis=-1, keepdims=True)
    h2 = (h2 - mu2) * jax.lax.rsqrt(var2 + eps) * g2 + be2
    # dropout_after_mlp: identity in eval mode

    o_ref[...] = h2.astype(o_ref.dtype).reshape(bt, s, e)


def _num_tensorcores_per_chip():
    """2 TensorCores per chip on v4/v5p (megacore) and v7x; 1 on v5e/v6e."""
    try:
        kind = jax.devices()[0].device_kind.lower()
    except Exception:
        return 1
    return 2 if any(t in kind for t in ("v7", "v5p", "v4")) else 1


def _vmem_limit_bytes():
    """~75% of physical per-TC VMEM (48 MiB on v7x, capped at 96 MiB on v5e/v6e)."""
    cap = None
    try:
        cap = getattr(pltpu.get_tpu_info(), "vmem_capacity_bytes", None)
    except Exception:
        cap = None
    if not cap:
        try:
            kind = jax.devices()[0].device_kind.lower()
        except Exception:
            kind = ""
        cap = (64 << 20) if "v7" in kind else (128 << 20)
    return int(min(cap * 3 // 4, 96 << 20))


def _choose_block_b(B, S, num_cores, target_rows=256):
    """Pick how many batch elements to process per grid step.

    Targets ~`target_rows` flattened rows per step (MXU utilization). Only forces
    >=2 grid steps when the chip actually has 2 TensorCores (the grid is a serial
    loop on single-TC chips, so splitting there just adds per-step overhead).
    Always divides B evenly (no ragged last block).
    """
    bb = max(1, min(B, target_rows // max(1, S)))
    if num_cores > 1 and B >= num_cores and pl.cdiv(B, bb) < num_cores:
        bb = pl.cdiv(B, num_cores)
    while B % bb:
        bb -= 1
    return bb


def encoder_layer_pallas(x, params, *, eps=1e-5, target_rows=256):
    B, S, E = x.shape
    bb = _choose_block_b(B, S, _num_tensorcores_per_chip(), target_rows)
    grid = (B // bb,)

    # bf16 activation I/O: the kernel is HBM-bound on activations at these sizes.
    x_bf = x.astype(jnp.bfloat16)

    # Fused QKV weight (E, 3E): one MXU weight push / one DMA instead of three.
    wqkv = jnp.concatenate(
        [params["wq"], params["wk"], params["wv"]], axis=1).astype(jnp.bfloat16)
    wo = params["wo"].astype(jnp.bfloat16)
    w1 = params["w1"].astype(jnp.bfloat16)
    w2 = params["w2"].astype(jnp.bfloat16)

    # Pack all bias / LayerNorm-affine vectors into one (16, E) f32 table.
    vec_names = ("bq", "bk", "bv", "bo", "b1", "b2", "g1", "be1", "g2", "be2")
    bias_tbl = jnp.concatenate(
        [params[n].reshape(1, E).astype(jnp.float32) for n in vec_names], axis=0)
    bias_tbl = jnp.concatenate(
        [bias_tbl, jnp.zeros((16 - bias_tbl.shape[0], E), jnp.float32)], axis=0)

    act_spec = pl.BlockSpec((bb, S, E), lambda b: (b, 0, 0))
    wqkv_spec = pl.BlockSpec((E, 3 * E), lambda b: (0, 0))   # constant index -> no re-DMA
    mat_spec = pl.BlockSpec((E, E), lambda b: (0, 0))
    bias_spec = pl.BlockSpec((16, E), lambda b: (0, 0))

    return pl.pallas_call(
        functools.partial(_layer_kernel, eps=eps),
        out_shape=jax.ShapeDtypeStruct((B, S, E), jnp.bfloat16),
        grid_spec=pltpu.PrefetchScalarGridSpec(
            num_scalar_prefetch=0,
            grid=grid,
            in_specs=[act_spec, wqkv_spec, mat_spec, mat_spec, mat_spec, bias_spec],
            out_specs=act_spec,
        ),
        compiler_params=pltpu.CompilerParams(
            dimension_semantics=("parallel",),
            vmem_limit_bytes=_vmem_limit_bytes()),
    )(x_bf, wqkv, wo, w1, w2, bias_tbl)


def _reference(x, p, eps=1e-5):
    def ln(h, g, b):
        mu = jnp.mean(h, axis=-1, keepdims=True)
        var = jnp.mean((h - mu) ** 2, axis=-1, keepdims=True)
        return (h - mu) / jnp.sqrt(var + eps) * g + b

    E = x.shape[-1]
    q = x @ p["wq"] + p["bq"]
    k = x @ p["wk"] + p["bk"]
    v = x @ p["wv"] + p["bv"]
    s = jnp.einsum("bqe,bke->bqk", q, k) / jnp.sqrt(jnp.float32(E))
    a = jax.nn.softmax(s, axis=-1)
    ctx = jnp.einsum("bqk,bke->bqe", a, v)
    attn_out = ctx @ p["wo"] + p["bo"]
    h = ln(x + attn_out, p["g1"], p["be1"])
    mlp = jnp.maximum(h @ p["w1"] + p["b1"], 0.0) @ p["w2"] + p["b2"]
    return ln(h + mlp, p["g2"], p["be2"])


def _init_params(key, E):
    names_mat = ["wq", "wk", "wv", "wo", "w1", "w2"]
    names_vec = ["bq", "bk", "bv", "bo", "b1", "b2"]
    keys = jax.random.split(key, len(names_mat) + len(names_vec))
    params = {}
    scale = 1.0 / jnp.sqrt(jnp.float32(E))
    for i, n in enumerate(names_mat):
        params[n] = jax.random.normal(keys[i], (E, E), jnp.float32) * scale
    for j, n in enumerate(names_vec):
        params[n] = jax.random.normal(keys[len(names_mat) + j], (1, E), jnp.float32) * 0.01
    # LayerNorm affine params (PyTorch default init: ones / zeros)
    params["g1"] = jnp.ones((1, E), jnp.float32)
    params["be1"] = jnp.zeros((1, E), jnp.float32)
    params["g2"] = jnp.ones((1, E), jnp.float32)
    params["be2"] = jnp.zeros((1, E), jnp.float32)
    return params


if __name__ == "__main__":
    # Small shapes consistent with the module: batch=2, seq=8, embedding=32.
    B, S, E = 2, 8, 32
    key = jax.random.PRNGKey(0)
    kx, kp, kx2 = jax.random.split(key, 3)
    x = jax.random.normal(kx, (B, S, E), jnp.float32)
    params = _init_params(kp, E)

    out = jax.block_until_ready(encoder_layer_pallas(x, params))
    ref = _reference(x, params)
    assert out.shape == (B, S, E) and out.dtype == jnp.bfloat16
    # bf16 activations end-to-end + bf16 MXU operands + approx reciprocal ->
    # loosened tolerance vs the f32 reference.
    err = float(jnp.max(jnp.abs(out.astype(jnp.float32) - ref)))
    assert err < 1e-1, f"mismatch vs reference (max|err|={err})"

    # Exercise the batch-blocked path (bb > 1 per grid step) at still-small shapes.
    B2 = 8
    x2 = jax.random.normal(kx2, (B2, S, E), jnp.float32)
    out2 = jax.block_until_ready(encoder_layer_pallas(x2, params))
    ref2 = _reference(x2, params)
    err2 = float(jnp.max(jnp.abs(out2.astype(jnp.float32) - ref2)))
    assert err2 < 1e-1, f"blocked-path mismatch (max|err|={err2})"

    print("KERNEL_OK")
</pallas_src>

<mosaic_0001>
module attributes {stable_mosaic.version = 11 : i64} {
  func.func @_layer_kernel(%arg0: i32, %arg1: memref<2x8x32xbf16, #tpu.memory_space<vmem>>, %arg2: memref<32x96xbf16, #tpu.memory_space<vmem>>, %arg3: memref<32x32xbf16, #tpu.memory_space<vmem>>, %arg4: memref<32x32xbf16, #tpu.memory_space<vmem>>, %arg5: memref<32x32xbf16, #tpu.memory_space<vmem>>, %arg6: memref<16x32xf32, #tpu.memory_space<vmem>>, %arg7: memref<2x8x32xbf16, #tpu.memory_space<vmem>>) attributes {dimension_semantics = [#tpu.dimension_semantics<parallel>], iteration_bounds = array<i64: 1>, scalar_prefetch = 0 : i64, scratch_operands = 0 : i64, tpu.core_type = #tpu.core_type<tc>, window_params = [{transform_indices = @transform_0, window_bounds = array<i64: 2, 8, 32>}, {pipeline_mode = #tpu.pipeline_mode<synchronous>, transform_indices = @transform_1, window_bounds = array<i64: 32, 96>}, {pipeline_mode = #tpu.pipeline_mode<synchronous>, transform_indices = @transform_2, window_bounds = array<i64: 32, 32>}, {pipeline_mode = #tpu.pipeline_mode<synchronous>, transform_indices = @transform_3, window_bounds = array<i64: 32, 32>}, {pipeline_mode = #tpu.pipeline_mode<synchronous>, transform_indices = @transform_4, window_bounds = array<i64: 32, 32>}, {pipeline_mode = #tpu.pipeline_mode<synchronous>, transform_indices = @transform_5, window_bounds = array<i64: 16, 32>}, {transform_indices = @transform_6, window_bounds = array<i64: 2, 8, 32>}]} {
    %c0 = arith.constant 0 : index
    %c0_0 = arith.constant 0 : index
    %0 = vector.load %arg6[%c0, %c0_0] : memref<16x32xf32, #tpu.memory_space<vmem>>, vector<1x32xf32>
    %c1 = arith.constant 1 : index
    %c0_1 = arith.constant 0 : index
    %1 = vector.load %arg6[%c1, %c0_1] : memref<16x32xf32, #tpu.memory_space<vmem>>, vector<1x32xf32>
    %c2 = arith.constant 2 : index
    %c0_2 = arith.constant 0 : index
    %2 = vector.load %arg6[%c2, %c0_2] : memref<16x32xf32, #tpu.memory_space<vmem>>, vector<1x32xf32>
    %c3 = arith.constant 3 : index
    %c0_3 = arith.constant 0 : index
    %3 = vector.load %arg6[%c3, %c0_3] : memref<16x32xf32, #tpu.memory_space<vmem>>, vector<1x32xf32>
    %c4 = arith.constant 4 : index
    %c0_4 = arith.constant 0 : index
    %4 = vector.load %arg6[%c4, %c0_4] : memref<16x32xf32, #tpu.memory_space<vmem>>, vector<1x32xf32>
    %c5 = arith.constant 5 : index
    %c0_5 = arith.constant 0 : index
    %5 = vector.load %arg6[%c5, %c0_5] : memref<16x32xf32, #tpu.memory_space<vmem>>, vector<1x32xf32>
    %c6 = arith.constant 6 : index
    %c0_6 = arith.constant 0 : index
    %6 = vector.load %arg6[%c6, %c0_6] : memref<16x32xf32, #tpu.memory_space<vmem>>, vector<1x32xf32>
    %c7 = arith.constant 7 : index
    %c0_7 = arith.constant 0 : index
    %7 = vector.load %arg6[%c7, %c0_7] : memref<16x32xf32, #tpu.memory_space<vmem>>, vector<1x32xf32>
    %c8 = arith.constant 8 : index
    %c0_8 = arith.constant 0 : index
    %8 = vector.load %arg6[%c8, %c0_8] : memref<16x32xf32, #tpu.memory_space<vmem>>, vector<1x32xf32>
    %c9 = arith.constant 9 : index
    %c0_9 = arith.constant 0 : index
    %9 = vector.load %arg6[%c9, %c0_9] : memref<16x32xf32, #tpu.memory_space<vmem>>, vector<1x32xf32>
    %c0_10 = arith.constant 0 : index
    %c0_11 = arith.constant 0 : index
    %c0_12 = arith.constant 0 : index
    %10 = vector.load %arg1[%c0_10, %c0_11, %c0_12] : memref<2x8x32xbf16, #tpu.memory_space<vmem>>, vector<2x8x32xbf16>
    %11 = vector.shape_cast %10 : vector<2x8x32xbf16> to vector<16x32xbf16>
    %12 = arith.extf %11 : vector<16x32xbf16> to vector<16x32xf32>
    %c0_13 = arith.constant 0 : index
    %c0_14 = arith.constant 0 : index
    %13 = vector.load %arg2[%c0_13, %c0_14] : memref<32x96xbf16, #tpu.memory_space<vmem>>, vector<32x96xbf16>
    %cst = arith.constant dense<0.000000e+00> : vector<16x96xf32>
    %14 = tpu.matmul %11, %13, %cst {dimension_numbers = #tpu.dot_dimension_numbers<[1], [0], [0], [1], [0, 0, 1, 1], [], []>} : vector<16x32xbf16>, vector<32x96xbf16>, vector<16x96xf32> -> vector<16x96xf32>
    %cst_15 = arith.constant 3.200000e+01 : f32
    %15 = math.sqrt %cst_15 : f32
    %cst_16 = arith.constant 1.000000e+00 : f32
    %16 = arith.divf %cst_16, %15 : f32
    %17 = vector.extract_strided_slice %14 {offsets = [0, 0], sizes = [16, 32], strides = [1, 1]} : vector<16x96xf32> to vector<16x32xf32>
    %18 = vector.broadcast %0 : vector<1x32xf32> to vector<16x32xf32>
    %19 = arith.addf %17, %18 : vector<16x32xf32>
    %20 = vector.broadcast %16 : f32 to vector<16x32xf32>
    %21 = arith.mulf %19, %20 : vector<16x32xf32>
    %22 = arith.truncf %21 : vector<16x32xf32> to vector<16x32xbf16>
    %23 = vector.shape_cast %22 : vector<16x32xbf16> to vector<2x8x32xbf16>
    %24 = vector.extract_strided_slice %14 {offsets = [0, 32], sizes = [16, 32], strides = [1, 1]} : vector<16x96xf32> to vector<16x32xf32>
    %25 = vector.broadcast %1 : vector<1x32xf32> to vector<16x32xf32>
    %26 = arith.addf %24, %25 : vector<16x32xf32>
    %27 = arith.truncf %26 : vector<16x32xf32> to vector<16x32xbf16>
    %28 = vector.shape_cast %27 : vector<16x32xbf16> to vector<2x8x32xbf16>
    %29 = vector.extract_strided_slice %14 {offsets = [0, 64], sizes = [16, 32], strides = [1, 1]} : vector<16x96xf32> to vector<16x32xf32>
    %30 = vector.broadcast %2 : vector<1x32xf32> to vector<16x32xf32>
    %31 = arith.addf %29, %30 : vector<16x32xf32>
    %32 = arith.truncf %31 : vector<16x32xf32> to vector<16x32xbf16>
    %33 = vector.shape_cast %32 : vector<16x32xbf16> to vector<2x8x32xbf16>
    %cst_17 = arith.constant dense<0.000000e+00> : vector<2x8x8xf32>
    %34 = tpu.matmul %23, %28, %cst_17 {dimension_numbers = #tpu.dot_dimension_numbers<[2], [2], [1], [1], [0, 0, 0, 1, 1, 1], [0], [0]>} : vector<2x8x32xbf16>, vector<2x8x32xbf16>, vector<2x8x8xf32> -> vector<2x8x8xf32>
    %cst_18 = arith.constant dense<0xFF800000> : vector<2x8xf32>
    %35 = vector.multi_reduction <maximumf>, %34, %cst_18 [2] : vector<2x8x8xf32> to vector<2x8xf32>
    %36 = vector.shape_cast %35 : vector<2x8xf32> to vector<2x8x1xf32>
    %37 = vector.broadcast %36 : vector<2x8x1xf32> to vector<2x8x8xf32>
    %38 = arith.subf %34, %37 : vector<2x8x8xf32>
    %39 = math.exp %38 : vector<2x8x8xf32>
    %cst_19 = arith.constant dense<0.000000e+00> : vector<2x8xf32>
    %40 = vector.multi_reduction <add>, %39, %cst_19 [2] : vector<2x8x8xf32> to vector<2x8xf32>
    %41 = vector.shape_cast %40 : vector<2x8xf32> to vector<2x8x1xf32>
    %42 = tpu.reciprocal %41 {approx = true} : vector<2x8x1xf32> -> vector<2x8x1xf32>
    %43 = vector.broadcast %42 : vector<2x8x1xf32> to vector<2x8x8xf32>
    %44 = arith.mulf %39, %43 : vector<2x8x8xf32>
    %45 = arith.truncf %44 : vector<2x8x8xf32> to vector<2x8x8xbf16>
    %cst_20 = arith.constant dense<0.000000e+00> : vector<2x8x32xf32>
    %46 = tpu.matmul %45, %33, %cst_20 {dimension_numbers = #tpu.dot_dimension_numbers<[2], [1], [1], [2], [0, 0, 0, 1, 1, 2], [0], [0]>} : vector<2x8x8xbf16>, vector<2x8x32xbf16>, vector<2x8x32xf32> -> vector<2x8x32xf32>
    %47 = arith.truncf %46 : vector<2x8x32xf32> to vector<2x8x32xbf16>
    %48 = vector.shape_cast %47 : vector<2x8x32xbf16> to vector<16x32xbf16>
    %c0_21 = arith.constant 0 : index
    %c0_22 = arith.constant 0 : index
    %49 = vector.load %arg3[%c0_21, %c0_22] : memref<32x32xbf16, #tpu.memory_space<vmem>>, vector<32x32xbf16>
    %cst_23 = arith.constant dense<0.000000e+00> : vector<16x32xf32>
    %50 = tpu.matmul %48, %49, %cst_23 {dimension_numbers = #tpu.dot_dimension_numbers<[1], [0], [0], [1], [0, 0, 1, 1], [], []>} : vector<16x32xbf16>, vector<32x32xbf16>, vector<16x32xf32> -> vector<16x32xf32>
    %51 = vector.broadcast %3 : vector<1x32xf32> to vector<16x32xf32>
    %52 = arith.addf %50, %51 : vector<16x32xf32>
    %53 = arith.addf %12, %52 : vector<16x32xf32>
    %cst_24 = arith.constant dense<0.000000e+00> : vector<16xf32>
    %54 = vector.multi_reduction <add>, %53, %cst_24 [1] : vector<16x32xf32> to vector<16xf32>
    %55 = vector.shape_cast %54 : vector<16xf32> to vector<16x1xf32>
    %cst_25 = arith.constant 3.200000e+01 : f32
    %56 = vector.broadcast %cst_25 : f32 to vector<16x1xf32>
    %57 = arith.divf %55, %56 : vector<16x1xf32>
    %58 = vector.broadcast %57 : vector<16x1xf32> to vector<16x32xf32>
    %59 = arith.subf %53, %58 : vector<16x32xf32>
    %60 = vector.broadcast %57 : vector<16x1xf32> to vector<16x32xf32>
    %61 = arith.subf %53, %60 : vector<16x32xf32>
    %62 = arith.mulf %59, %61 : vector<16x32xf32>
    %cst_26 = arith.constant dense<0.000000e+00> : vector<16xf32>
    %63 = vector.multi_reduction <add>, %62, %cst_26 [1] : vector<16x32xf32> to vector<16xf32>
    %64 = vector.shape_cast %63 : vector<16xf32> to vector<16x1xf32>
    %cst_27 = arith.constant 3.200000e+01 : f32
    %65 = vector.broadcast %cst_27 : f32 to vector<16x1xf32>
    %66 = arith.divf %64, %65 : vector<16x1xf32>
    %67 = vector.broadcast %57 : vector<16x1xf32> to vector<16x32xf32>
    %68 = arith.subf %53, %67 : vector<16x32xf32>
    %cst_28 = arith.constant 9.99999974E-6 : f32
    %69 = vector.broadcast %cst_28 : f32 to vector<16x1xf32>
    %70 = arith.addf %66, %69 : vector<16x1xf32>
    %71 = math.rsqrt %70 : vector<16x1xf32>
    %72 = vector.broadcast %71 : vector<16x1xf32> to vector<16x32xf32>
    %73 = arith.mulf %68, %72 : vector<16x32xf32>
    %74 = vector.broadcast %6 : vector<1x32xf32> to vector<16x32xf32>
    %75 = arith.mulf %73, %74 : vector<16x32xf32>
    %76 = vector.broadcast %7 : vector<1x32xf32> to vector<16x32xf32>
    %77 = arith.addf %75, %76 : vector<16x32xf32>
    %78 = arith.truncf %77 : vector<16x32xf32> to vector<16x32xbf16>
    %c0_29 = arith.constant 0 : index
    %c0_30 = arith.constant 0 : index
    %79 = vector.load %arg4[%c0_29, %c0_30] : memref<32x32xbf16, #tpu.memory_space<vmem>>, vector<32x32xbf16>
    %cst_31 = arith.constant dense<0.000000e+00> : vector<16x32xf32>
    %80 = tpu.matmul %78, %79, %cst_31 {dimension_numbers = #tpu.dot_dimension_numbers<[1], [0], [0], [1], [0, 0, 1, 1], [], []>} : vector<16x32xbf16>, vector<32x32xbf16>, vector<16x32xf32> -> vector<16x32xf32>
    %81 = vector.broadcast %4 : vector<1x32xf32> to vector<16x32xf32>
    %82 = arith.addf %80, %81 : vector<16x32xf32>
    %cst_32 = arith.constant 0.000000e+00 : f32
    %83 = vector.broadcast %cst_32 : f32 to vector<16x32xf32>
    %84 = arith.maximumf %82, %83 : vector<16x32xf32>
    %85 = arith.truncf %84 : vector<16x32xf32> to vector<16x32xbf16>
    %c0_33 = arith.constant 0 : index
    %c0_34 = arith.constant 0 : index
    %86 = vector.load %arg5[%c0_33, %c0_34] : memref<32x32xbf16, #tpu.memory_space<vmem>>, vector<32x32xbf16>
    %cst_35 = arith.constant dense<0.000000e+00> : vector<16x32xf32>
    %87 = tpu.matmul %85, %86, %cst_35 {dimension_numbers = #tpu.dot_dimension_numbers<[1], [0], [0], [1], [0, 0, 1, 1], [], []>} : vector<16x32xbf16>, vector<32x32xbf16>, vector<16x32xf32> -> vector<16x32xf32>
    %88 = vector.broadcast %5 : vector<1x32xf32> to vector<16x32xf32>
    %89 = arith.addf %87, %88 : vector<16x32xf32>
    %90 = arith.addf %77, %89 : vector<16x32xf32>
    %cst_36 = arith.constant dense<0.000000e+00> : vector<16xf32>
    %91 = vector.multi_reduction <add>, %90, %cst_36 [1] : vector<16x32xf32> to vector<16xf32>
    %92 = vector.shape_cast %91 : vector<16xf32> to vector<16x1xf32>
    %cst_37 = arith.constant 3.200000e+01 : f32
    %93 = vector.broadcast %cst_37 : f32 to vector<16x1xf32>
    %94 = arith.divf %92, %93 : vector<16x1xf32>
    %95 = vector.broadcast %94 : vector<16x1xf32> to vector<16x32xf32>
    %96 = arith.subf %90, %95 : vector<16x32xf32>
    %97 = vector.broadcast %94 : vector<16x1xf32> to vector<16x32xf32>
    %98 = arith.subf %90, %97 : vector<16x32xf32>
    %99 = arith.mulf %96, %98 : vector<16x32xf32>
    %cst_38 = arith.constant dense<0.000000e+00> : vector<16xf32>
    %100 = vector.multi_reduction <add>, %99, %cst_38 [1] : vector<16x32xf32> to vector<16xf32>
    %101 = vector.shape_cast %100 : vector<16xf32> to vector<16x1xf32>
    %cst_39 = arith.constant 3.200000e+01 : f32
    %102 = vector.broadcast %cst_39 : f32 to vector<16x1xf32>
    %103 = arith.divf %101, %102 : vector<16x1xf32>
    %104 = vector.broadcast %94 : vector<16x1xf32> to vector<16x32xf32>
    %105 = arith.subf %90, %104 : vector<16x32xf32>
    %cst_40 = arith.constant 9.99999974E-6 : f32
    %106 = vector.broadcast %cst_40 : f32 to vector<16x1xf32>
    %107 = arith.addf %103, %106 : vector<16x1xf32>
    %108 = math.rsqrt %107 : vector<16x1xf32>
    %109 = vector.broadcast %108 : vector<16x1xf32> to vector<16x32xf32>
    %110 = arith.mulf %105, %109 : vector<16x32xf32>
    %111 = vector.broadcast %8 : vector<1x32xf32> to vector<16x32xf32>
    %112 = arith.mulf %110, %111 : vector<16x32xf32>
    %113 = vector.broadcast %9 : vector<1x32xf32> to vector<16x32xf32>
    %114 = arith.addf %112, %113 : vector<16x32xf32>
    %115 = arith.truncf %114 : vector<16x32xf32> to vector<16x32xbf16>
    %116 = vector.shape_cast %115 : vector<16x32xbf16> to vector<2x8x32xbf16>
    %c0_41 = arith.constant 0 : index
    %c0_42 = arith.constant 0 : index
    %c0_43 = arith.constant 0 : index
    %117 = vector.load %arg7[%c0_41, %c0_42, %c0_43] : memref<2x8x32xbf16, #tpu.memory_space<vmem>>, vector<2x8x32xbf16>
    tpu.vector_store %arg7[%c0_41, %c0_42, %c0_43], %116 {strides = array<i32>} : memref<2x8x32xbf16, #tpu.memory_space<vmem>>, vector<2x8x32xbf16>,
    return
  }
  func.func @transform_0(%arg0: i32) -> (i32, i32, i32) {
    %c0_i32 = arith.constant 0 : i32
    %c0_i32_0 = arith.constant 0 : i32
    %c0_i32_1 = arith.constant 0 : i32
    return %arg0, %c0_i32, %c0_i32_0 : i32, i32, i32
  }
  func.func @transform_1(%arg0: i32) -> (i32, i32) {
    %c0_i32 = arith.constant 0 : i32
    %c0_i32_0 = arith.constant 0 : i32
    %c0_i32_1 = arith.constant 0 : i32
    return %c0_i32, %c0_i32_0 : i32, i32
  }
  func.func @transform_2(%arg0: i32) -> (i32, i32) {
    %c0_i32 = arith.constant 0 : i32
    %c0_i32_0 = arith.constant 0 : i32
    %c0_i32_1 = arith.constant 0 : i32
    return %c0_i32, %c0_i32_0 : i32, i32
  }
  func.func @transform_3(%arg0: i32) -> (i32, i32) {
    %c0_i32 = arith.constant 0 : i32
    %c0_i32_0 = arith.constant 0 : i32
    %c0_i32_1 = arith.constant 0 : i32
    return %c0_i32, %c0_i32_0 : i32, i32
  }
  func.func @transform_4(%arg0: i32) -> (i32, i32) {
    %c0_i32 = arith.constant 0 : i32
    %c0_i32_0 = arith.constant 0 : i32
    %c0_i32_1 = arith.constant 0 : i32
    return %c0_i32, %c0_i32_0 : i32, i32
  }
  func.func @transform_5(%arg0: i32) -> (i32, i32) {
    %c0_i32 = arith.constant 0 : i32
    %c0_i32_0 = arith.constant 0 : i32
    %c0_i32_1 = arith.constant 0 : i32
    return %c0_i32, %c0_i32_0 : i32, i32
  }
  func.func @transform_6(%arg0: i32) -> (i32, i32, i32) {
    %c0_i32 = arith.constant 0 : i32
    %c0_i32_0 = arith.constant 0 : i32
    %c0_i32_1 = arith.constant 0 : i32
    return %arg0, %c0_i32, %c0_i32_0 : i32, i32, i32
  }
}

</mosaic_0001>

<llo_original>
// kernel: tpu_custom_call.1
$region0: #{tpu_custom_call.1}
  #allocation0 [shape = 'u32[]', space=smem, size = 0x4, offset = 0x4, fixed_abs, tag = 'smem constant byte address 0x4 - core index']
  #allocation1 [shape = 'u32[144,128]{1,0:T(1,128)}', space=vmem, size = 0x12000, scoped, tag = 'internal scratch']
  %s0 = inlined_call_operand.hbm [shape: bf16[2,8,32], index: 0, kind: input, shape index: {}]
  %s1 = inlined_call_operand.hbm [shape: bf16[32,96], index: 1, kind: input, shape index: {}]
  %s2 = inlined_call_operand.hbm [shape: bf16[32,32], index: 2, kind: input, shape index: {}]
  %s3 = inlined_call_operand.hbm [shape: bf16[32,32], index: 3, kind: input, shape index: {}]
  %s4 = inlined_call_operand.hbm [shape: bf16[32,32], index: 4, kind: input, shape index: {}]
  %s5 = inlined_call_operand.hbm [shape: f32[16,32], index: 5, kind: input, shape index: {}]
  %s6 = inlined_call_operand.hbm [shape: bf16[2,8,32], index: 6, kind: output, shape index: {}]
  %s7 = sld [smem:[#allocation0]]
  $region58: #{tpu_custom_call.1} parent=0
    _
  %s9 = ssub.s32 1, %s7
  %s10 = scalar_select 0, %s9, %s7
  $region1: #{tpu_custom_call.1} parent=0
    #allocation2 [shape = 'u8[4096]{0}', space=vmem, size = 0x1000, scoped, tag = 'input window, operand 0, single buffered']
    #allocation3 [shape = 's32[1]{0}', space=sflag, size = 0x4, scoped, tag = 'scoped memory for tpu_custom_call.1']
    #allocation4 [shape = 's32[1]{0}', space=sflag, size = 0x4, scoped, tag = 'scoped memory for tpu_custom_call.1']
    #allocation5 [shape = 'u8[8192]{0}', space=vmem, size = 0x2000, scoped, tag = 'input window, operand 1, single buffered']
    #allocation6 [shape = 's32[1]{0}', space=sflag, size = 0x4, scoped, tag = 'scoped memory for tpu_custom_call.1']
    #allocation7 [shape = 'u8[8192]{0}', space=vmem, size = 0x2000, scoped, tag = 'input window, operand 2, single buffered']
    #allocation8 [shape = 'u8[8192]{0}', space=vmem, size = 0x2000, scoped, tag = 'input window, operand 3, single buffered']
    #allocation9 [shape = 's32[1]{0}', space=sflag, size = 0x4, scoped, tag = 'scoped memory for tpu_custom_call.1']
    #allocation10 [shape = 'u8[8192]{0}', space=vmem, size = 0x2000, scoped, tag = 'input window, operand 4, single buffered']
    #allocation11 [shape = 'u8[8192]{0}', space=vmem, size = 0x2000, scoped, tag = 'input window, operand 5, single buffered']
    #allocation12 [shape = 's32[1]{0}', space=sflag, size = 0x4, scoped, tag = 'scoped memory for tpu_custom_call.1']
    #allocation13 [shape = 'u8[4096]{0}', space=vmem, size = 0x1000, scoped, tag = 'output window, operand 0, single buffered']
    %11 = vsyncpa [#allocation3], 0
    %12 = vsyncpa [#allocation6], 0
    %13 = vsyncpa [#allocation9], 0
    %14 = vsyncpa [#allocation12], 0
    %15 = vsyncpa [#allocation4], 0
    // Predicated region
    $region2: #{tpu_custom_call.1} parent=1 // pred_check
      _
    $region3: #{tpu_custom_call.1} parent=1 // pred_check_branch
      %17 = sbr.rel (0) target = $region5
    $region4: #{tpu_custom_call.1} parent=1 // pred_region
      %s19 = ssub.s32 128, 128
      %20 = vsyncadd [#allocation3], %s19
      %s21 = sshll.u32 [#allocation2], 4
      %s22 = int_to_ptr.vmem [resolvable:$true] %s21
      %27 = dma.hbm_to_vmem [thread:$0]  %s0, 128, %s22, [#allocation3], 64, 64, 4
    $region5: #{tpu_custom_call.1} parent=1 // pred_fallthru
      _
    // Predicated region
    $region6: #{tpu_custom_call.1} parent=1 // pred_check
      _
    $region7: #{tpu_custom_call.1} parent=1 // pred_check_branch
      %29 = sbr.rel (0) target = $region9
    $region8: #{tpu_custom_call.1} parent=1 // pred_region
      %s31 = ssub.s32 256, 256
      %32 = vsyncadd [#allocation6], %s31
      %s33 = sshll.u32 [#allocation5], 4
      %s34 = int_to_ptr.vmem [resolvable:$true] %s33
      %39 = dma.hbm_to_vmem [thread:$0]  %s1, 256, %s34, [#allocation6], 64, 64, 4
    $region9: #{tpu_custom_call.1} parent=1 // pred_fallthru
      _
    // Predicated region
    $region10: #{tpu_custom_call.1} parent=1 // pred_check
      _
    $region11: #{tpu_custom_call.1} parent=1 // pred_check_branch
      %41 = sbr.rel (0) target = $region13
    $region12: #{tpu_custom_call.1} parent=1 // pred_region
      %s43 = ssub.s32 256, 256
      %44 = vsyncadd [#allocation6], %s43
      %s45 = sshll.u32 [#allocation7], 4
      %s46 = int_to_ptr.vmem [resolvable:$true] %s45
      %51 = dma.hbm_to_vmem [thread:$0]  %s2, 256, %s46, [#allocation6], 64, 64, 4
    $region13: #{tpu_custom_call.1} parent=1 // pred_fallthru
      _
    // Predicated region
    $region14: #{tpu_custom_call.1} parent=1 // pred_check
      _
    $region15: #{tpu_custom_call.1} parent=1 // pred_check_branch
      %53 = sbr.rel (0) target = $region17
    $region16: #{tpu_custom_call.1} parent=1 // pred_region
      %s55 = ssub.s32 256, 256
      %56 = vsyncadd [#allocation9], %s55
      %s57 = sshll.u32 [#allocation8], 4
      %s58 = int_to_ptr.vmem [resolvable:$true] %s57
      %63 = dma.hbm_to_vmem [thread:$0]  %s3, 256, %s58, [#allocation9], 64, 64, 4
    $region17: #{tpu_custom_call.1} parent=1 // pred_fallthru
      _
    // Predicated region
    $region18: #{tpu_custom_call.1} parent=1 // pred_check
      _
    $region19: #{tpu_custom_call.1} parent=1 // pred_check_branch
      %65 = sbr.rel (0) target = $region21
    $region20: #{tpu_custom_call.1} parent=1 // pred_region
      %s67 = ssub.s32 256, 256
      %68 = vsyncadd [#allocation9], %s67
      %s69 = sshll.u32 [#allocation10], 4
      %s70 = int_to_ptr.vmem [resolvable:$true] %s69
      %75 = dma.hbm_to_vmem [thread:$0]  %s4, 256, %s70, [#allocation9], 64, 64, 4
    $region21: #{tpu_custom_call.1} parent=1 // pred_fallthru
      _
    // Predicated region
    $region22: #{tpu_custom_call.1} parent=1 // pred_check
      _
    $region23: #{tpu_custom_call.1} parent=1 // pred_check_branch
      %77 = sbr.rel (0) target = $region25
    $region24: #{tpu_custom_call.1} parent=1 // pred_region
      %s79 = ssub.s32 256, 256
      %80 = vsyncadd [#allocation12], %s79
      %s81 = sshll.u32 [#allocation11], 4
      %s82 = int_to_ptr.vmem [resolvable:$true] %s81
      %87 = dma.hbm_to_vmem [thread:$0]  %s5, 256, %s82, [#allocation12], 128, 128, 8
    $region25: #{tpu_custom_call.1} parent=1 // pred_fallthru
      _
    // Predicated region
    $region26: #{tpu_custom_call.1} parent=1 // pred_check
      _
    $region27: #{tpu_custom_call.1} parent=1 // pred_check_branch
      %89 = sbr.rel (0) target = $region29
    $region28: #{tpu_custom_call.1} parent=1 // pred_region
      %90 = dma.done [#allocation3], 128
    $region29: #{tpu_custom_call.1} parent=1 // pred_fallthru
      _
    // Predicated region
    $region30: #{tpu_custom_call.1} parent=1 // pred_check
      _
    $region31: #{tpu_custom_call.1} parent=1 // pred_check_branch
      %92 = sbr.rel (0) target = $region33
    $region32: #{tpu_custom_call.1} parent=1 // pred_region
      %93 = dma.done [#allocation6], 256
    $region33: #{tpu_custom_call.1} parent=1 // pred_fallthru
      _
    // Predicated region
    $region34: #{tpu_custom_call.1} parent=1 // pred_check
      _
    $region35: #{tpu_custom_call.1} parent=1 // pred_check_branch
      %95 = sbr.rel (0) target = $region37
    $region36: #{tpu_custom_call.1} parent=1 // pred_region
      %96 = dma.done [#allocation6], 256
    $region37: #{tpu_custom_call.1} parent=1 // pred_fallthru
      _
    // Predicated region
    $region38: #{tpu_custom_call.1} parent=1 // pred_check
      _
    $region39: #{tpu_custom_call.1} parent=1 // pred_check_branch
      %98 = sbr.rel (0) target = $region41
    $region40: #{tpu_custom_call.1} parent=1 // pred_region
      %99 = dma.done [#allocation9], 256
    $region41: #{tpu_custom_call.1} parent=1 // pred_fallthru
      _
    // Predicated region
    $region42: #{tpu_custom_call.1} parent=1 // pred_check
      _
    $region43: #{tpu_custom_call.1} parent=1 // pred_check_branch
      %101 = sbr.rel (0) target = $region45
    $region44: #{tpu_custom_call.1} parent=1 // pred_region
      %102 = dma.done [#allocation9], 256
    $region45: #{tpu_custom_call.1} parent=1 // pred_fallthru
      _
    // Predicated region
    $region46: #{tpu_custom_call.1} parent=1 // pred_check
      _
    $region47: #{tpu_custom_call.1} parent=1 // pred_check_branch
      %104 = sbr.rel (0) target = $region49
    $region48: #{tpu_custom_call.1} parent=1 // pred_region
      %105 = dma.done [#allocation12], 256
    $region49: #{tpu_custom_call.1} parent=1 // pred_fallthru
      _
    %v107 = vld [vmem:[#allocation11] sm:$0x1]
    %v108 = vld [vmem:[#allocation11 + $0x1] sm:$0x1]
    %v109 = vld [vmem:[#allocation11 + $0x2] sm:$0x1]
    %v110 = vld [vmem:[#allocation11 + $0x3] sm:$0x1]
    %v111 = vld [vmem:[#allocation11 + $0x4] sm:$0x1]
    %v112 = vld [vmem:[#allocation11 + $0x5] sm:$0x1]
    %v113 = vld [vmem:[#allocation11 + $0x6] sm:$0x1]
    %v114 = vld [vmem:[#allocation11 + $0x7] sm:$0x1]
    %v115 = vld [vmem:[#allocation11 + $0x8] sm:$0x1]
    %v116 = vld [vmem:[#allocation11 + $0x9] sm:$0x1]
    %v117 = vld [vmem:[#allocation2] sm:$0xf]
    %v118 = vld [vmem:[#allocation2 + $0x4] sm:$0xf]
    %v119 = vunpack.c.l.bf16 %v117
    %v120 = vunpack.c.l.bf16 %v118
    %v121 = vld [vmem:[#allocation5] sm:$0xf]
    %v122 = vld [vmem:[#allocation5 + $0x4] sm:$0xf]
    %v123 = vld [vmem:[#allocation5 + $0x8] sm:$0xf]
    %v124 = vld [vmem:[#allocation5 + $0xc] sm:$0xf]
    %v127 = vunpack.c.l.b16 %v117
    %v128 = vunpack.c.l.b16 %v118
    %v129 = vpack.c.b16 %v128, %v127
    %v134 = vunpack.c.l.b16 %v121
    %v135 = vunpack.c.l.b16 %v122
    %v136 = vunpack.c.l.b16 %v123
    %v137 = vunpack.c.l.b16 %v124
    %v138 = vpack.c.b16 %v135, %v134
    %v139 = vpack.c.b16 %v137, %v136
    %vm142 = vcmask 261120
    %v144 = vsel %vm142, %v129, 0
    %146 = vmatprep.subr.bf16.mxu0 0
    %147 = vmatpush1.bf16.msra.mxu0 %v138
    %148 = vmatprep.subr.bf16.mxu0 0
    %149 = vmatpush1.bf16.msra.mxu0 %v139
    %150 = vmatprep.subr.bf16.mxu0 0
    %151 = vmatpush1.bf16.msra.mxu0 0
    %152 = vmatprep.subr.bf16.mxu0 0
    %153 = vmatpush1.bf16.msra.mxu0 0
    %154 = vmatprep.subr.bf16.mxu0 0
    %155 = vmatpush1.bf16.msra.mxu0 0
    %156 = vmatprep.subr.bf16.mxu0 0
    %157 = vmatpush1.bf16.msra.mxu0 0
    %158 = vmatprep.subr.bf16.mxu0 0
    %159 = vmatpush1.bf16.msra.mxu0 0
    %160 = vmatprep.subr.bf16.mxu0 0
    %161 = vmatpush1.bf16.msra.mxu0 0
    %162 = vmatprep.subr.bf16.mxu0 0
    %163 = vmatpush1.bf16.msra.mxu0 0
    %164 = vmatprep.subr.bf16.mxu0 0
    %165 = vmatpush1.bf16.msra.mxu0 0
    %166 = vmatprep.subr.bf16.mxu0 0
    %167 = vmatpush1.bf16.msra.mxu0 0
    %168 = vmatprep.subr.bf16.mxu0 0
    %169 = vmatpush1.bf16.msra.mxu0 0
    %170 = vmatprep.subr.bf16.mxu0 0
    %171 = vmatpush1.bf16.msra.mxu0 0
    %172 = vmatprep.subr.bf16.mxu0 0
    %173 = vmatpush1.bf16.msra.mxu0 0
    %174 = vmatprep.subr.bf16.mxu0 0
    %175 = vmatpush1.bf16.msra.mxu0 0
    %176 = vmatprep.subr.bf16.mxu0 0
    %177 = vmatpush1.bf16.msra.mxu0 0
    %178 = vmatprep.mubr.bf16.mxu0 0
    %179 = vmatmul.mubr.bf16.gmra.mrb[0].mxu0 %v144
    %v180 = vpop.f32.mrb[0].mxu0
    %v181 = vadd.f32 0.0, %v180
    %v182 = vpop.f32.mrb[0].mxu0
    %v183 = vpop.f32.mrb[0].mxu0
    %v184 = vadd.f32 0.0, %v183
    %v185 = vpop.f32.mrb[0].mxu0
    %186 = vdwg.mxu0
    %v187 = vlaneseq
    %v188 = vshrl.u32 %v187, 7
    %v189 = vsub.s32 0, %v188
    %v190 = vrot.slane %v107, %v189
    %v191 = vadd.f32 %v181, %v190
    %v192 = vadd.f32 %v184, %v190
    %v193 = vmul.f32 %v191, 0.17677669
    %v194 = vmul.f32 %v192, 0.17677669
    %v195 = vpack.c.bf16 %v194, %v193
    %v197 = vunpack.c.l.b16 %v195
    %v198 = vunpack.c.h.b16 %v195
    %v199 = vpack.c.b16 %v197, %v197
    %v200 = vpack.c.b16 %v198, %v198
    %v201 = vlaneseq
    %v202 = vshrl.u32 %v201, 7
    %v203 = vsub.s32 0, %v202
    %v204 = vrot.slane %v108, %v203
    %206 = vrot.lane.b32.xlu0 %v204, 32
    %v207 = vpop.permute.xlu0 %206
    %v209 = vadd.f32 %v181, %v207
    %v210 = vadd.f32 %v184, %v207
    %v211 = vpack.c.bf16 %v210, %v209
    %v213 = vunpack.c.l.b16 %v211
    %v214 = vunpack.c.h.b16 %v211
    %v215 = vlaneseq
    %v216 = vshrl.u32 %v215, 7
    %v217 = vsub.s32 0, %v216
    %v218 = vrot.slane %v109, %v217
    %220 = vrot.lane.b32.xlu0 %v218, 64
    %v221 = vpop.permute.xlu0 %220
    %v223 = vadd.f32 %v181, %v221
    %v224 = vadd.f32 %v184, %v221
    %v225 = vpack.c.bf16 %v224, %v223
    %v227 = vunpack.c.l.b16 %v225
    %v228 = vunpack.c.h.b16 %v225
    %v229 = vpack.c.b16 %v213, %v213
    %230 = vrot.lane.b32.xlu0 %v229, 96
    %v231 = vpop.permute.xlu0 %230
    %v233 = vsel %vm142, %v199, 0
    %v236 = vsel %vm142, %v231, 0
    %238 = vmatprep.subr.bf16.mxu0 0
    %239 = vmatpush1.bf16.xpose.msra.mxu0 %v236
    %240 = vmatprep.subr.bf16.mxu0 0
    %241 = vmatpush1.bf16.xpose.msra.mxu0 0
    %242 = vmatprep.subr.bf16.mxu0 0
    %243 = vmatpush1.bf16.xpose.msra.mxu0 0
    %244 = vmatprep.subr.bf16.mxu0 0
    %245 = vmatpush1.bf16.xpose.msra.mxu0 0
    %246 = vmatprep.subr.bf16.mxu0 0
    %247 = vmatpush1.bf16.xpose.msra.mxu0 0
    %248 = vmatprep.subr.bf16.mxu0 0
    %249 = vmatpush1.bf16.xpose.msra.mxu0 0
    %250 = vmatprep.subr.bf16.mxu0 0
    %251 = vmatpush1.bf16.xpose.msra.mxu0 0
    %252 = vmatprep.subr.bf16.mxu0 0
    %253 = vmatpush1.bf16.xpose.msra.mxu0 0
    %254 = vmatprep.subr.bf16.mxu0 0
    %255 = vmatpush1.bf16.xpose.msra.mxu0 0
    %256 = vmatprep.subr.bf16.mxu0 0
    %257 = vmatpush1.bf16.xpose.msra.mxu0 0
    %258 = vmatprep.subr.bf16.mxu0 0
    %259 = vmatpush1.bf16.xpose.msra.mxu0 0
    %260 = vmatprep.subr.bf16.mxu0 0
    %261 = vmatpush1.bf16.xpose.msra.mxu0 0
    %262 = vmatprep.subr.bf16.mxu0 0
    %263 = vmatpush1.bf16.xpose.msra.mxu0 0
    %264 = vmatprep.subr.bf16.mxu0 0
    %265 = vmatpush1.bf16.xpose.msra.mxu0 0
    %266 = vmatprep.subr.bf16.mxu0 0
    %267 = vmatpush1.bf16.xpose.msra.mxu0 0
    %268 = vmatprep.subr.bf16.mxu0 0
    %269 = vmatpush1.bf16.xpose.msra.mxu0 0
    %270 = vmatprep.mubr.bf16.mxu0 0
    %271 = vmatmul.mubr.bf16.gmra.mrb[0].mxu0 %v233
    %v272 = vpop.f32.mrb[0].mxu0
    %v273 = vadd.f32 0.0, %v272
    %v274 = vpop.f32.mrb[0].mxu0
    %v275 = vpop.f32.mrb[0].mxu0
    %v276 = vpop.f32.mrb[0].mxu0
    %277 = vdwg.mxu0
    %v278 = vpack.c.b16 %v214, %v214
    %279 = vrot.lane.b32.xlu0 %v278, 96
    %v280 = vpop.permute.xlu0 %279
    %v282 = vsel %vm142, %v200, 0
    %v285 = vsel %vm142, %v280, 0
    %287 = vmatprep.subr.bf16.mxu0 0
    %288 = vmatpush1.bf16.xpose.msra.mxu0 %v285
    %289 = vmatprep.subr.bf16.mxu0 0
    %290 = vmatpush1.bf16.xpose.msra.mxu0 0
    %291 = vmatprep.subr.bf16.mxu0 0
    %292 = vmatpush1.bf16.xpose.msra.mxu0 0
    %293 = vmatprep.subr.bf16.mxu0 0
    %294 = vmatpush1.bf16.xpose.msra.mxu0 0
    %295 = vmatprep.subr.bf16.mxu0 0
    %296 = vmatpush1.bf16.xpose.msra.mxu0 0
    %297 = vmatprep.subr.bf16.mxu0 0
    %298 = vmatpush1.bf16.xpose.msra.mxu0 0
    %299 = vmatprep.subr.bf16.mxu0 0
    %300 = vmatpush1.bf16.xpose.msra.mxu0 0
    %301 = vmatprep.subr.bf16.mxu0 0
    %302 = vmatpush1.bf16.xpose.msra.mxu0 0
    %303 = vmatprep.subr.bf16.mxu0 0
    %304 = vmatpush1.bf16.xpose.msra.mxu0 0
    %305 = vmatprep.subr.bf16.mxu0 0
    %306 = vmatpush1.bf16.xpose.msra.mxu0 0
    %307 = vmatprep.subr.bf16.mxu0 0
    %308 = vmatpush1.bf16.xpose.msra.mxu0 0
    %309 = vmatprep.subr.bf16.mxu0 0
    %310 = vmatpush1.bf16.xpose.msra.mxu0 0
    %311 = vmatprep.subr.bf16.mxu0 0
    %312 = vmatpush1.bf16.xpose.msra.mxu0 0
    %313 = vmatprep.subr.bf16.mxu0 0
    %314 = vmatpush1.bf16.xpose.msra.mxu0 0
    %315 = vmatprep.subr.bf16.mxu0 0
    %316 = vmatpush1.bf16.xpose.msra.mxu0 0
    %317 = vmatprep.subr.bf16.mxu0 0
    %318 = vmatpush1.bf16.xpose.msra.mxu0 0
    %319 = vmatprep.mubr.bf16.mxu0 0
    %320 = vmatmul.mubr.bf16.gmra.mrb[0].mxu0 %v282
    %v321 = vpop.f32.mrb[0].mxu0
    %v322 = vadd.f32 0.0, %v321
    %v323 = vpop.f32.mrb[0].mxu0
    %v324 = vpop.f32.mrb[0].mxu0
    %v325 = vpop.f32.mrb[0].mxu0
    %326 = vdwg.mxu0
    %vm327 = vcmask 64512
    %v328 = vsel %vm327, %v273, -inf
    %329 = vmax.xlane.f32.xlu0 %v328
    %v330 = vpop.xlane.xlu0 %329
    %v331 = vsel %vm327, %v322, -inf
    %332 = vmax.xlane.f32.xlu0 %v331
    %v333 = vpop.xlane.xlu0 %332
    %v334 = vsub.f32 %v273, %v330
    %v335 = vsub.f32 %v322, %v333
    %v336 = vmul.f32 %v334, 1.442695
    %v337 = vpow.pop %v336
    %v338 = vmul.f32 %v335, 1.442695
    %v339 = vpow.pop %v338
    %v340 = vsel %vm327, %v337, 0.0
    %341 = vadd.xlane.f32.xlu0 %v340
    %v342 = vpop.xlane.xlu0 %341
    %v343 = vsel %vm327, %v339, 0.0
    %344 = vadd.xlane.f32.xlu0 %v343
    %v345 = vpop.xlane.xlu0 %344
    %v346 = vrcp.pop %v342
    %v347 = vrcp.pop %v345
    %v348 = vmul.f32 %v337, %v346
    %v349 = vmul.f32 %v339, %v347
    %v350 = vpack.c.bf16 %v348, %v348
    %v351 = vpack.c.bf16 %v349, %v349
    %v352 = vpack.c.b16 %v227, %v227
    %353 = vrot.lane.b32.xlu0 %v352, 64
    %v354 = vpop.permute.xlu0 %353
    %v356 = vsel %vm327, %v350, 0
    %vm358 = vcmask 1043456
    %v360 = vsel %vm358, %v354, 0
    %362 = vmatprep.subr.bf16.mxu0 0
    %363 = vmatpush1.bf16.msra.mxu0 %v360
    %364 = vmatprep.subr.bf16.mxu0 0
    %365 = vmatpush1.bf16.msra.mxu0 0
    %366 = vmatprep.subr.bf16.mxu0 0
    %367 = vmatpush1.bf16.msra.mxu0 0
    %368 = vmatprep.subr.bf16.mxu0 0
    %369 = vmatpush1.bf16.msra.mxu0 0
    %370 = vmatprep.subr.bf16.mxu0 0
    %371 = vmatpush1.bf16.msra.mxu0 0
    %372 = vmatprep.subr.bf16.mxu0 0
    %373 = vmatpush1.bf16.msra.mxu0 0
    %374 = vmatprep.subr.bf16.mxu0 0
    %375 = vmatpush1.bf16.msra.mxu0 0
    %376 = vmatprep.subr.bf16.mxu0 0
    %377 = vmatpush1.bf16.msra.mxu0 0
    %378 = vmatprep.subr.bf16.mxu0 0
    %379 = vmatpush1.bf16.msra.mxu0 0
    %380 = vmatprep.subr.bf16.mxu0 0
    %381 = vmatpush1.bf16.msra.mxu0 0
    %382 = vmatprep.subr.bf16.mxu0 0
    %383 = vmatpush1.bf16.msra.mxu0 0
    %384 = vmatprep.subr.bf16.mxu0 0
    %385 = vmatpush1.bf16.msra.mxu0 0
    %386 = vmatprep.subr.bf16.mxu0 0
    %387 = vmatpush1.bf16.msra.mxu0 0
    %388 = vmatprep.subr.bf16.mxu0 0
    %389 = vmatpush1.bf16.msra.mxu0 0
    %390 = vmatprep.subr.bf16.mxu0 0
    %391 = vmatpush1.bf16.msra.mxu0 0
    %392 = vmatprep.subr.bf16.mxu0 0
    %393 = vmatpush1.bf16.msra.mxu0 0
    %394 = vmatprep.mubr.bf16.mxu0 0
    %395 = vmatmul.mubr.bf16.gmra.mrb[0].mxu0 %v356
    %v396 = vpop.f32.mrb[0].mxu0
    %v397 = vadd.f32 0.0, %v396
    %v398 = vpop.f32.mrb[0].mxu0
    %v399 = vpop.f32.mrb[0].mxu0
    %v400 = vpop.f32.mrb[0].mxu0
    %401 = vdwg.mxu0
    %v402 = vpack.c.b16 %v228, %v228
    %403 = vrot.lane.b32.xlu0 %v402, 64
    %v404 = vpop.permute.xlu0 %403
    %v406 = vsel %vm327, %v351, 0
    %v409 = vsel %vm358, %v404, 0
    %411 = vmatprep.subr.bf16.mxu0 0
    %412 = vmatpush1.bf16.msra.mxu0 %v409
    %413 = vmatprep.subr.bf16.mxu0 0
    %414 = vmatpush1.bf16.msra.mxu0 0
    %415 = vmatprep.subr.bf16.mxu0 0
    %416 = vmatpush1.bf16.msra.mxu0 0
    %417 = vmatprep.subr.bf16.mxu0 0
    %418 = vmatpush1.bf16.msra.mxu0 0
    %419 = vmatprep.subr.bf16.mxu0 0
    %420 = vmatpush1.bf16.msra.mxu0 0
    %421 = vmatprep.subr.bf16.mxu0 0
    %422 = vmatpush1.bf16.msra.mxu0 0
    %423 = vmatprep.subr.bf16.mxu0 0
    %424 = vmatpush1.bf16.msra.mxu0 0
    %425 = vmatprep.subr.bf16.mxu0 0
    %426 = vmatpush1.bf16.msra.mxu0 0
    %427 = vmatprep.subr.bf16.mxu0 0
    %428 = vmatpush1.bf16.msra.mxu0 0
    %429 = vmatprep.subr.bf16.mxu0 0
    %430 = vmatpush1.bf16.msra.mxu0 0
    %431 = vmatprep.subr.bf16.mxu0 0
    %432 = vmatpush1.bf16.msra.mxu0 0
    %433 = vmatprep.subr.bf16.mxu0 0
    %434 = vmatpush1.bf16.msra.mxu0 0
    %435 = vmatprep.subr.bf16.mxu0 0
    %436 = vmatpush1.bf16.msra.mxu0 0
    %437 = vmatprep.subr.bf16.mxu0 0
    %438 = vmatpush1.bf16.msra.mxu0 0
    %439 = vmatprep.subr.bf16.mxu0 0
    %440 = vmatpush1.bf16.msra.mxu0 0
    %441 = vmatprep.subr.bf16.mxu0 0
    %442 = vmatpush1.bf16.msra.mxu0 0
    %443 = vmatprep.mubr.bf16.mxu0 0
    %444 = vmatmul.mubr.bf16.gmra.mrb[0].mxu0 %v406
    %v445 = vpop.f32.mrb[0].mxu0
    %v446 = vadd.f32 0.0, %v445
    %v447 = vpop.f32.mrb[0].mxu0
    %v448 = vpop.f32.mrb[0].mxu0
    %v449 = vpop.f32.mrb[0].mxu0
    %450 = vdwg.mxu0
    %v451 = vpack.c.bf16 %v397, %v397
    %v452 = vpack.c.bf16 %v446, %v446
    %v453 = vld [vmem:[#allocation7] sm:$0xf]
    %v454 = vld [vmem:[#allocation7 + $0x4] sm:$0xf]
    %v455 = vld [vmem:[#allocation7 + $0x8] sm:$0xf]
    %v456 = vld [vmem:[#allocation7 + $0xc] sm:$0xf]
    %v457 = vlaneseq
    %v458 = vshrl.u32 %v457, 7
    %v459 = vsub.s32 0, %v458
    %v460 = vrot.slane %v110, %v459
    %v463 = vunpack.c.l.b16 %v451
    %v464 = vunpack.c.l.b16 %v452
    %v465 = vpack.c.b16 %v464, %v463
    %v470 = vunpack.c.l.b16 %v453
    %v471 = vunpack.c.l.b16 %v454
    %v472 = vunpack.c.l.b16 %v455
    %v473 = vunpack.c.l.b16 %v456
    %v474 = vpack.c.b16 %v471, %v470
    %v475 = vpack.c.b16 %v473, %v472
    %v479 = vsel %vm142, %v465, 0
    %481 = vmatprep.subr.bf16.mxu0 0
    %482 = vmatpush1.bf16.msra.mxu0 %v474
    %483 = vmatprep.subr.bf16.mxu0 0
    %484 = vmatpush1.bf16.msra.mxu0 %v475
    %485 = vmatprep.subr.bf16.mxu0 0
    %486 = vmatpush1.bf16.msra.mxu0 0
    %487 = vmatprep.subr.bf16.mxu0 0
    %488 = vmatpush1.bf16.msra.mxu0 0
    %489 = vmatprep.subr.bf16.mxu0 0
    %490 = vmatpush1.bf16.msra.mxu0 0
    %491 = vmatprep.subr.bf16.mxu0 0
    %492 = vmatpush1.bf16.msra.mxu0 0
    %493 = vmatprep.subr.bf16.mxu0 0
    %494 = vmatpush1.bf16.msra.mxu0 0
    %495 = vmatprep.subr.bf16.mxu0 0
    %496 = vmatpush1.bf16.msra.mxu0 0
    %497 = vmatprep.subr.bf16.mxu0 0
    %498 = vmatpush1.bf16.msra.mxu0 0
    %499 = vmatprep.subr.bf16.mxu0 0
    %500 = vmatpush1.bf16.msra.mxu0 0
    %501 = vmatprep.subr.bf16.mxu0 0
    %502 = vmatpush1.bf16.msra.mxu0 0
    %503 = vmatprep.subr.bf16.mxu0 0
    %504 = vmatpush1.bf16.msra.mxu0 0
    %505 = vmatprep.subr.bf16.mxu0 0
    %506 = vmatpush1.bf16.msra.mxu0 0
    %507 = vmatprep.subr.bf16.mxu0 0
    %508 = vmatpush1.bf16.msra.mxu0 0
    %509 = vmatprep.subr.bf16.mxu0 0
    %510 = vmatpush1.bf16.msra.mxu0 0
    %511 = vmatprep.subr.bf16.mxu0 0
    %512 = vmatpush1.bf16.msra.mxu0 0
    %513 = vmatprep.mubr.bf16.mxu0 0
    %514 = vmatmul.mubr.bf16.gmra.mrb[0].mxu0 %v479
    %v515 = vpop.f32.mrb[0].mxu0
    %v516 = vadd.f32 %v460, %v515
    %v517 = vpop.f32.mrb[0].mxu0
    %v518 = vpop.f32.mrb[0].mxu0
    %v519 = vadd.f32 %v460, %v518
    %v520 = vpop.f32.mrb[0].mxu0
    %521 = vdwg.mxu0
    %v522 = vadd.f32 %v119, %v516
    %v523 = vadd.f32 %v120, %v519
    %v524 = vsel %vm142, %v522, 0.0
    %525 = vadd.xlane.f32.xlu0 %v524
    %v526 = vpop.xlane.xlu0 %525
    %v527 = vsel %vm142, %v523, 0.0
    %528 = vadd.xlane.f32.xlu0 %v527
    %v529 = vpop.xlane.xlu0 %528
    %v530 = vrcp.pop 32.0
    %v531 = vmul.f32 %v526, %v530
    %v532 = vmul.f32 %v529, %v530
    %v533 = vsub.f32 %v522, %v531
    %v534 = vsub.f32 %v523, %v532
    %v535 = vmul.f32 %v533, %v533
    %v536 = vmul.f32 %v534, %v534
    %v537 = vsel %vm142, %v535, 0.0
    %538 = vadd.xlane.f32.xlu0 %v537
    %v539 = vpop.xlane.xlu0 %538
    %v540 = vsel %vm142, %v536, 0.0
    %541 = vadd.xlane.f32.xlu0 %v540
    %v542 = vpop.xlane.xlu0 %541
    %v543 = vmul.f32 %v539, %v530
    %v544 = vmul.f32 %v542, %v530
    %v545 = vadd.f32 %v543, 1e-05
    %v546 = vadd.f32 %v544, 1e-05
    %v547 = vrsqrt.pop %v545
    %v548 = vrsqrt.pop %v546
    %v549 = vmul.f32 %v533, %v547
    %v550 = vmul.f32 %v534, %v548
    %v551 = vlaneseq
    %v552 = vshrl.u32 %v551, 7
    %v553 = vsub.s32 0, %v552
    %v554 = vrot.slane %v113, %v553
    %v555 = vmul.f32 %v549, %v554
    %v556 = vmul.f32 %v550, %v554
    %v557 = vlaneseq
    %v558 = vshrl.u32 %v557, 7
    %v559 = vsub.s32 0, %v558
    %v560 = vrot.slane %v114, %v559
    %v561 = vadd.f32 %v555, %v560
    %v562 = vadd.f32 %v556, %v560
    %v563 = vpack.c.bf16 %v562, %v561
    %v564 = vld [vmem:[#allocation8] sm:$0xf]
    %v565 = vld [vmem:[#allocation8 + $0x4] sm:$0xf]
    %v566 = vld [vmem:[#allocation8 + $0x8] sm:$0xf]
    %v567 = vld [vmem:[#allocation8 + $0xc] sm:$0xf]
    %v568 = vlaneseq
    %v569 = vshrl.u32 %v568, 7
    %v570 = vsub.s32 0, %v569
    %v571 = vrot.slane %v111, %v570
    %v576 = vunpack.c.l.b16 %v564
    %v577 = vunpack.c.l.b16 %v565
    %v578 = vunpack.c.l.b16 %v566
    %v579 = vunpack.c.l.b16 %v567
    %v580 = vpack.c.b16 %v577, %v576
    %v581 = vpack.c.b16 %v579, %v578
    %v585 = vsel %vm142, %v563, 0
    %587 = vmatprep.subr.bf16.mxu0 0
    %588 = vmatpush1.bf16.msra.mxu0 %v580
    %589 = vmatprep.subr.bf16.mxu0 0
    %590 = vmatpush1.bf16.msra.mxu0 %v581
    %591 = vmatprep.subr.bf16.mxu0 0
    %592 = vmatpush1.bf16.msra.mxu0 0
    %593 = vmatprep.subr.bf16.mxu0 0
    %594 = vmatpush1.bf16.msra.mxu0 0
    %595 = vmatprep.subr.bf16.mxu0 0
    %596 = vmatpush1.bf16.msra.mxu0 0
    %597 = vmatprep.subr.bf16.mxu0 0
    %598 = vmatpush1.bf16.msra.mxu0 0
    %599 = vmatprep.subr.bf16.mxu0 0
    %600 = vmatpush1.bf16.msra.mxu0 0
    %601 = vmatprep.subr.bf16.mxu0 0
    %602 = vmatpush1.bf16.msra.mxu0 0
    %603 = vmatprep.subr.bf16.mxu0 0
    %604 = vmatpush1.bf16.msra.mxu0 0
    %605 = vmatprep.subr.bf16.mxu0 0
    %606 = vmatpush1.bf16.msra.mxu0 0
    %607 = vmatprep.subr.bf16.mxu0 0
    %608 = vmatpush1.bf16.msra.mxu0 0
    %609 = vmatprep.subr.bf16.mxu0 0
    %610 = vmatpush1.bf16.msra.mxu0 0
    %611 = vmatprep.subr.bf16.mxu0 0
    %612 = vmatpush1.bf16.msra.mxu0 0
    %613 = vmatprep.subr.bf16.mxu0 0
    %614 = vmatpush1.bf16.msra.mxu0 0
    %615 = vmatprep.subr.bf16.mxu0 0
    %616 = vmatpush1.bf16.msra.mxu0 0
    %617 = vmatprep.subr.bf16.mxu0 0
    %618 = vmatpush1.bf16.msra.mxu0 0
    %619 = vmatprep.mubr.bf16.mxu0 0
    %620 = vmatmul.mubr.bf16.gmra.mrb[0].mxu0 %v585
    %v621 = vpop.f32.mrb[0].mxu0
    %v622 = vadd.f32 %v571, %v621
    %v623 = vpop.f32.mrb[0].mxu0
    %v624 = vpop.f32.mrb[0].mxu0
    %v625 = vadd.f32 %v571, %v624
    %v626 = vpop.f32.mrb[0].mxu0
    %627 = vdwg.mxu0
    %v628 = vmax.f32 %v622, 0.0
    %v629 = vmax.f32 %v625, 0.0
    %v630 = vpack.c.bf16 %v629, %v628
    %v631 = vld [vmem:[#allocation10] sm:$0xf]
    %v632 = vld [vmem:[#allocation10 + $0x4] sm:$0xf]
    %v633 = vld [vmem:[#allocation10 + $0x8] sm:$0xf]
    %v634 = vld [vmem:[#allocation10 + $0xc] sm:$0xf]
    %v635 = vlaneseq
    %v636 = vshrl.u32 %v635, 7
    %v637 = vsub.s32 0, %v636
    %v638 = vrot.slane %v112, %v637
    %v643 = vunpack.c.l.b16 %v631
    %v644 = vunpack.c.l.b16 %v632
    %v645 = vunpack.c.l.b16 %v633
    %v646 = vunpack.c.l.b16 %v634
    %v647 = vpack.c.b16 %v644, %v643
    %v648 = vpack.c.b16 %v646, %v645
    %v652 = vsel %vm142, %v630, 0
    %654 = vmatprep.subr.bf16.mxu0 0
    %655 = vmatpush1.bf16.msra.mxu0 %v647
    %656 = vmatprep.subr.bf16.mxu0 0
    %657 = vmatpush1.bf16.msra.mxu0 %v648
    %658 = vmatprep.subr.bf16.mxu0 0
    %659 = vmatpush1.bf16.msra.mxu0 0
    %660 = vmatprep.subr.bf16.mxu0 0
    %661 = vmatpush1.bf16.msra.mxu0 0
    %662 = vmatprep.subr.bf16.mxu0 0
    %663 = vmatpush1.bf16.msra.mxu0 0
    %664 = vmatprep.subr.bf16.mxu0 0
    %665 = vmatpush1.bf16.msra.mxu0 0
    %666 = vmatprep.subr.bf16.mxu0 0
    %667 = vmatpush1.bf16.msra.mxu0 0
    %668 = vmatprep.subr.bf16.mxu0 0
    %669 = vmatpush1.bf16.msra.mxu0 0
    %670 = vmatprep.subr.bf16.mxu0 0
    %671 = vmatpush1.bf16.msra.mxu0 0
    %672 = vmatprep.subr.bf16.mxu0 0
    %673 = vmatpush1.bf16.msra.mxu0 0
    %674 = vmatprep.subr.bf16.mxu0 0
    %675 = vmatpush1.bf16.msra.mxu0 0
    %676 = vmatprep.subr.bf16.mxu0 0
    %677 = vmatpush1.bf16.msra.mxu0 0
    %678 = vmatprep.subr.bf16.mxu0 0
    %679 = vmatpush1.bf16.msra.mxu0 0
    %680 = vmatprep.subr.bf16.mxu0 0
    %681 = vmatpush1.bf16.msra.mxu0 0
    %682 = vmatprep.subr.bf16.mxu0 0
    %683 = vmatpush1.bf16.msra.mxu0 0
    %684 = vmatprep.subr.bf16.mxu0 0
    %685 = vmatpush1.bf16.msra.mxu0 0
    %686 = vmatprep.mubr.bf16.mxu0 0
    %687 = vmatmul.mubr.bf16.gmra.mrb[0].mxu0 %v652
    %v688 = vpop.f32.mrb[0].mxu0
    %v689 = vadd.f32 %v638, %v688
    %v690 = vpop.f32.mrb[0].mxu0
    %v691 = vpop.f32.mrb[0].mxu0
    %v692 = vadd.f32 %v638, %v691
    %v693 = vpop.f32.mrb[0].mxu0
    %694 = vdwg.mxu0
    %v695 = vadd.f32 %v561, %v689
    %v696 = vadd.f32 %v562, %v692
    %v697 = vsel %vm142, %v695, 0.0
    %698 = vadd.xlane.f32.xlu0 %v697
    %v699 = vpop.xlane.xlu0 %698
    %v700 = vsel %vm142, %v696, 0.0
    %701 = vadd.xlane.f32.xlu0 %v700
    %v702 = vpop.xlane.xlu0 %701
    %v703 = vmul.f32 %v699, %v530
    %v704 = vmul.f32 %v702, %v530
    %v705 = vsub.f32 %v695, %v703
    %v706 = vsub.f32 %v696, %v704
    %v707 = vmul.f32 %v705, %v705
    %v708 = vmul.f32 %v706, %v706
    %v709 = vsel %vm142, %v707, 0.0
    %710 = vadd.xlane.f32.xlu0 %v709
    %v711 = vpop.xlane.xlu0 %710
    %v712 = vsel %vm142, %v708, 0.0
    %713 = vadd.xlane.f32.xlu0 %v712
    %v714 = vpop.xlane.xlu0 %713
    %v715 = vmul.f32 %v711, %v530
    %v716 = vmul.f32 %v714, %v530
    %v717 = vadd.f32 %v715, 1e-05
    %v718 = vadd.f32 %v716, 1e-05
    %v719 = vrsqrt.pop %v717
    %v720 = vrsqrt.pop %v718
    %v721 = vmul.f32 %v705, %v719
    %v722 = vmul.f32 %v706, %v720
    %v723 = vlaneseq
    %v724 = vshrl.u32 %v723, 7
    %v725 = vsub.s32 0, %v724
    %v726 = vrot.slane %v115, %v725
    %v727 = vmul.f32 %v721, %v726
    %v728 = vmul.f32 %v722, %v726
    %v729 = vlaneseq
    %v730 = vshrl.u32 %v729, 7
    %v731 = vsub.s32 0, %v730
    %v732 = vrot.slane %v116, %v731
    %v733 = vadd.f32 %v727, %v732
    %v734 = vadd.f32 %v728, %v732
    %v735 = vpack.c.bf16 %v734, %v733
    %v737 = vunpack.c.l.b16 %v735
    %v738 = vunpack.c.h.b16 %v735
    %v739 = vpack.c.b16 %v737, %v737
    %v740 = vpack.c.b16 %v738, %v738
    %vm743 = vcmask 257024
    %744 = vst.msk [vmem:[#allocation13] sm:$0xf] %vm743, %v739
    %745 = vst.msk [vmem:[#allocation13 + $0x4] sm:$0xf] %vm743, %v740
    // Predicated region
    $region50: #{tpu_custom_call.1} parent=1 // pred_check
      _
    $region51: #{tpu_custom_call.1} parent=1 // pred_check_branch
      %747 = sbr.rel (0) target = $region53
    $region52: #{tpu_custom_call.1} parent=1 // pred_region
      %s749 = ssub.s32 128, 128
      %750 = vsyncadd [#allocation4], %s749
      %s751 = sshll.u32 [#allocation13], 4
      %s752 = int_to_ptr.vmem [resolvable:$true] %s751
      %757 = dma.vmem_to_hbm [thread:$0]  %s752, 128, %s6, [#allocation4], 64, 64, 4
    $region53: #{tpu_custom_call.1} parent=1 // pred_fallthru
      _
    // Predicated region
    $region54: #{tpu_custom_call.1} parent=1 // pred_check
      _
    $region55: #{tpu_custom_call.1} parent=1 // pred_check_branch
      %759 = sbr.rel (0) target = $region57
    $region56: #{tpu_custom_call.1} parent=1 // pred_region
      %760 = dma.done [#allocation4], 128
    $region57: #{tpu_custom_call.1} parent=1 // pred_fallthru
      _
    %761 = vsyncpa [#allocation3], 1
    %762 = vsyncpa [#allocation6], 1
    %763 = vsyncpa [#allocation9], 1
    %764 = vsyncpa [#allocation12], 1
    %765 = vsyncpa [#allocation4], 1

</llo_original>
